<compile_context>
chip_gen: v6e
topology: v6e:2x2x1
jax: 0.10.0
libtpu: 0.0.40
codegen_flags: <defaults>
</compile_context>

<pallas_src>
import functools

import jax
import jax.numpy as jnp
from jax import lax
from jax.experimental import pallas as pl
from jax.experimental.pallas import tpu as pltpu


def _round_up(x, m):
    return (x + m - 1) // m * m


def lstm_classifier_kernel(tok_ref, embproj_ref, whh_ref, wheads_ref,
                           bheads_ref, out_ref, *, seq_len, batch_p):
    """Embedding gather + single-layer LSTM recurrence + fused heads.

    tok_ref     : [T*Bp, 1]  int32 time-major tokens (batch padded to 8)
    embproj_ref : [Vp, 4H]   per-token (embedding @ W_ih.T + b_ih + b_hh),
                             vocab padded to 128 rows (padded rows zero)
    whh_ref     : [4H, 4H]   recurrent projection; only rows [0:H) nonzero
    wheads_ref  : [4H, NOUT] fused action|target heads; only rows [0:H) nonzero
    bheads_ref  : [1, NOUT]  fused head bias (f32)
    out_ref     : [Bp, NOUT] lane-dense fused logits (action | target | pad)
    """
    T, Bp = seq_len, batch_p
    TB = tok_ref.shape[0]
    Vp, G = embproj_ref.shape          # G = 4H (= 128 for H = 32)
    H = G // 4
    w_dtype = whh_ref.dtype            # MXU operand dtype (bf16 or f32)

    # --- In-kernel embedding gather + input projection (+ bias), one matmul.
    # onehot row picks the token's row of embproj exactly (0/1 weights).
    vocab_iota = lax.broadcasted_iota(jnp.int32, (TB, Vp), 1)
    onehot = jnp.where(vocab_iota == tok_ref[...], 1.0, 0.0).astype(w_dtype)
    xproj = jnp.dot(onehot, embproj_ref[...],
                    preferred_element_type=jnp.float32)      # [T*Bp, 4H] f32

    # --- Hoisted loop invariants: stationary recurrent weight + lane masks.
    whh = whh_ref[...]
    lane = lax.broadcasted_iota(jnp.int32, (Bp, G), 1)
    is_g = (lane >= 2 * H) & (lane < 3 * H)                  # tanh gate lanes
    # Single-tanh activation: sigmoid(x) = 0.5 * tanh(x/2) + 0.5.
    act_scale = jnp.where(is_g, 1.0, 0.5).astype(jnp.float32)

    # h/c carried at full 4H lane width; only lanes [0:H) are meaningful.
    # Garbage lanes never leak: whh / wheads have zero rows [H:4H).
    h = jnp.zeros((Bp, G), jnp.float32)
    c = jnp.zeros((Bp, G), jnp.float32)

    for t in range(T):                                       # fully unrolled
        x_t = xproj[t * Bp:(t + 1) * Bp, :]                  # static slice
        gates = x_t + jnp.dot(h.astype(w_dtype), whh,
                              preferred_element_type=jnp.float32)
        tpre = jnp.tanh(gates * act_scale)                   # one EUP push
        act = jnp.where(is_g, tpre, 0.5 * tpre + 0.5)
        # PyTorch gate order i, f, g, o at lane offsets 0 / H / 2H / 3H;
        # roll each gate to lanes [0:H) on the XLU (free slot vs VALU/EUP).
        i_al = act
        f_al = pltpu.roll(act, shift=3 * H, axis=1)
        g_al = pltpu.roll(act, shift=2 * H, axis=1)
        o_al = pltpu.roll(act, shift=1 * H, axis=1)
        c = f_al * c + i_al * g_al
        h = o_al * jnp.tanh(c)

    # --- Fused heads: single lane-dense output, one MXU drain.
    out_ref[...] = (jnp.dot(h.astype(w_dtype), wheads_ref[...],
                            preferred_element_type=jnp.float32)
                    + bheads_ref[...])


def init_params(key, vocab_size, embedding_dim, n_actions, n_targets):
    H = embedding_dim
    ks = jax.random.split(key, 9)
    s = 1.0 / jnp.sqrt(jnp.float32(H))
    u = lambda k, shape: jax.random.uniform(k, shape, jnp.float32, -s, s)

    emb = jax.random.normal(ks[0], (vocab_size, embedding_dim), jnp.float32) * 0.1
    emb = emb.at[0].set(0.0)  # padding_idx=0 -> zero row

    return dict(
        embedding=emb,
        w_ih=u(ks[1], (4 * H, embedding_dim)),   # PyTorch layout [4H, E]
        w_hh=u(ks[2], (4 * H, H)),               # [4H, H]
        b_ih=u(ks[3], (4 * H,)),
        b_hh=u(ks[4], (4 * H,)),
        w_act=u(ks[5], (n_actions, H)),          # [A, H]
        b_act=u(ks[6], (n_actions,)),
        w_tgt=u(ks[7], (n_targets, H)),          # [Tg, H]
        b_tgt=u(ks[8], (n_targets,)),
    )


@functools.partial(jax.jit,
                   static_argnames=("n_actions", "n_targets", "compute_dtype"))
def instruction_classifier_forward(x_tokens, params, *, n_actions, n_targets,
                                   compute_dtype=jnp.bfloat16):
    """x_tokens: int32 [B, T]. Returns (action_space [B, A], target_space [B, Tg]).

    compute_dtype controls only the MXU operand dtype (default bf16, native on
    every generation's MXU); accumulation and all elementwise math stay f32.
    """
    B, T = x_tokens.shape
    H = params["w_hh"].shape[1]
    G = 4 * H
    Bp = _round_up(max(B, 1), 8)            # pad batch to f32 sublane tile
    n_out = n_actions + n_targets
    NOUT = _round_up(n_out, 128)            # lane-dense fused head output
    vocab = params["embedding"].shape[0]
    Vp = _round_up(vocab, 128)              # one-hot contraction width

    # Tokens: time-major, batch padded (with padding_idx=0), flattened [T*Bp,1].
    tok_tm = jnp.transpose(x_tokens.astype(jnp.int32), (1, 0))   # [T, B]
    tok_tm = jnp.pad(tok_tm, ((0, 0), (0, Bp - B)))              # [T, Bp]
    tok_flat = tok_tm.reshape(T * Bp, 1)

    # Fold embedding gather + input projection + combined bias into one table:
    # row v = embedding[v] @ W_ih.T + (b_ih + b_hh); padded vocab rows zero.
    b = (params["b_ih"] + params["b_hh"]).reshape(1, G)
    emb_proj = params["embedding"] @ params["w_ih"].T + b        # [vocab, 4H]
    emb_proj_p = jnp.zeros((Vp, G), jnp.float32).at[:vocab, :].set(emb_proj)
    emb_proj_p = emb_proj_p.astype(compute_dtype)

    # Recurrent weights extended to [4H, 4H]: only rows [0:H) nonzero so the
    # garbage lanes of the 4H-wide h carry contribute nothing.
    w_hh_ext = jnp.zeros((G, G), jnp.float32).at[:H, :].set(params["w_hh"].T)
    w_hh_ext = w_hh_ext.astype(compute_dtype)

    # Fused + padded heads: [4H, NOUT], rows [0:H) = [W_act.T | W_tgt.T | 0].
    w_heads = jnp.concatenate([params["w_act"].T, params["w_tgt"].T], axis=1)
    w_heads_ext = jnp.zeros((G, NOUT), jnp.float32).at[:H, :n_out].set(w_heads)
    w_heads_ext = w_heads_ext.astype(compute_dtype)
    b_heads = jnp.zeros((1, NOUT), jnp.float32).at[0, :n_out].set(
        jnp.concatenate([params["b_act"], params["b_tgt"]]))

    vmem_spec = pl.BlockSpec(memory_space=pltpu.MemorySpace.VMEM)
    kernel = functools.partial(lstm_classifier_kernel, seq_len=T, batch_p=Bp)

    fused = pl.pallas_call(
        kernel,
        out_shape=jax.ShapeDtypeStruct((Bp, NOUT), jnp.float32),
        in_specs=[vmem_spec] * 5,
        out_specs=vmem_spec,
    )(tok_flat, emb_proj_p, w_hh_ext, w_heads_ext, b_heads)

    action = fused[:B, :n_actions]
    target = fused[:B, n_actions:n_out]
    return action, target


def reference_forward(x_tokens, params):
    H = params["w_hh"].shape[1]
    embeds = jnp.take(params["embedding"], x_tokens, axis=0)  # [B, T, E]
    B, T, _ = embeds.shape
    h = jnp.zeros((B, H), jnp.float32)
    c = jnp.zeros((B, H), jnp.float32)
    b = params["b_ih"] + params["b_hh"]
    for t in range(T):
        gates = embeds[:, t, :] @ params["w_ih"].T + h @ params["w_hh"].T + b
        i = jax.nn.sigmoid(gates[:, 0 * H:1 * H])
        f = jax.nn.sigmoid(gates[:, 1 * H:2 * H])
        g = jnp.tanh(gates[:, 2 * H:3 * H])
        o = jax.nn.sigmoid(gates[:, 3 * H:4 * H])
        c = f * c + i * g
        h = o * jnp.tanh(c)
    action = h @ params["w_act"].T + params["b_act"]
    target = h @ params["w_tgt"].T + params["b_tgt"]
    return action, target


if __name__ == "__main__":
    # Small shapes consistent with the module's forward.
    vocab_size = 16
    input_len = 8       # seq_len
    n_actions = 5
    n_targets = 7
    embedding_dim = 32  # hidden_dim == embedding_dim
    batch = 2

    key = jax.random.PRNGKey(0)
    pkey, xkey = jax.random.split(key)
    params = init_params(pkey, vocab_size, embedding_dim, n_actions, n_targets)
    x = jax.random.randint(xkey, (batch, input_len), 0, vocab_size, dtype=jnp.int32)

    ref_action, ref_target = reference_forward(x, params)

    # Exact-math check: f32 MXU operands, tight tolerance (validates one-hot
    # gather, gate order, roll direction, zero-row extension).
    a32, t32 = instruction_classifier_forward(
        x, params, n_actions=n_actions, n_targets=n_targets,
        compute_dtype=jnp.float32)
    jax.block_until_ready((a32, t32))
    assert a32.shape == (batch, n_actions) and t32.shape == (batch, n_targets)
    assert jnp.allclose(a32, ref_action, atol=1e-4, rtol=1e-4)
    assert jnp.allclose(t32, ref_target, atol=1e-4, rtol=1e-4)

    # Default fast path: bf16 MXU operands, f32 accumulation / elementwise.
    action, target = instruction_classifier_forward(
        x, params, n_actions=n_actions, n_targets=n_targets)
    jax.block_until_ready((action, target))
    assert action.shape == (batch, n_actions) and target.shape == (batch, n_targets)
    assert jnp.allclose(action, ref_action, atol=5e-2, rtol=5e-2)
    assert jnp.allclose(target, ref_target, atol=5e-2, rtol=5e-2)

    print("KERNEL_OK")
</pallas_src>

<mosaic_0001>
module attributes {stable_mosaic.version = 11 : i64} {
  func.func @lstm_classifier_kernel(%arg0: memref<64x1xi32, #tpu.memory_space<vmem>>, %arg1: memref<128x128xf32, #tpu.memory_space<vmem>>, %arg2: memref<128x128xf32, #tpu.memory_space<vmem>>, %arg3: memref<128x128xf32, #tpu.memory_space<vmem>>, %arg4: memref<1x128xf32, #tpu.memory_space<vmem>>, %arg5: memref<8x128xf32, #tpu.memory_space<vmem>>) attributes {dimension_semantics = [], scalar_prefetch = 0 : i64, scratch_operands = 0 : i64, tpu.core_type = #tpu.core_type<tc>} {
    %0 = tpu.iota {dimensions = array<i32: 1>} : vector<64x128xi32>
    %c0 = arith.constant 0 : index
    %c0_0 = arith.constant 0 : index
    %1 = vector.load %arg0[%c0, %c0_0] : memref<64x1xi32, #tpu.memory_space<vmem>>, vector<64x1xi32>
    %2 = vector.broadcast %1 : vector<64x1xi32> to vector<64x128xi32>
    %3 = arith.cmpi eq, %0, %2 : vector<64x128xi32>
    %cst = arith.constant 1.000000e+00 : f32
    %cst_1 = arith.constant 0.000000e+00 : f32
    %4 = vector.broadcast %cst : f32 to vector<64x128xf32>
    %5 = vector.broadcast %cst_1 : f32 to vector<64x128xf32>
    %6 = arith.select %3, %4, %5 : vector<64x128xi1>, vector<64x128xf32>
    %c0_2 = arith.constant 0 : index
    %c0_3 = arith.constant 0 : index
    %7 = vector.load %arg1[%c0_2, %c0_3] : memref<128x128xf32, #tpu.memory_space<vmem>>, vector<128x128xf32>
    %cst_4 = arith.constant dense<0.000000e+00> : vector<64x128xf32>
    %8 = tpu.matmul %6, %7, %cst_4 {dimension_numbers = #tpu.dot_dimension_numbers<[1], [0], [0], [1], [0, 0, 1, 1], [], []>} : vector<64x128xf32>, vector<128x128xf32>, vector<64x128xf32> -> vector<64x128xf32>
    %c0_5 = arith.constant 0 : index
    %c0_6 = arith.constant 0 : index
    %9 = vector.load %arg2[%c0_5, %c0_6] : memref<128x128xf32, #tpu.memory_space<vmem>>, vector<128x128xf32>
    %10 = tpu.iota {dimensions = array<i32: 1>} : vector<8x128xi32>
    %c64_i32 = arith.constant 64 : i32
    %11 = vector.broadcast %c64_i32 : i32 to vector<8x128xi32>
    %12 = arith.cmpi sge, %10, %11 : vector<8x128xi32>
    %c96_i32 = arith.constant 96 : i32
    %13 = vector.broadcast %c96_i32 : i32 to vector<8x128xi32>
    %14 = arith.cmpi slt, %10, %13 : vector<8x128xi32>
    %15 = arith.andi %12, %14 : vector<8x128xi1>
    %cst_7 = arith.constant 1.000000e+00 : f32
    %cst_8 = arith.constant 5.000000e-01 : f32
    %16 = vector.broadcast %cst_7 : f32 to vector<8x128xf32>
    %17 = vector.broadcast %cst_8 : f32 to vector<8x128xf32>
    %18 = arith.select %15, %16, %17 : vector<8x128xi1>, vector<8x128xf32>
    %cst_9 = arith.constant 0.000000e+00 : f32
    %19 = vector.broadcast %cst_9 : f32 to vector<8x128xf32>
    %cst_10 = arith.constant 0.000000e+00 : f32
    %20 = vector.broadcast %cst_10 : f32 to vector<8x128xf32>
    %21 = vector.extract_strided_slice %8 {offsets = [0, 0], sizes = [8, 128], strides = [1, 1]} : vector<64x128xf32> to vector<8x128xf32>
    %cst_11 = arith.constant dense<0.000000e+00> : vector<8x128xf32>
    %22 = tpu.matmul %19, %9, %cst_11 {dimension_numbers = #tpu.dot_dimension_numbers<[1], [0], [0], [1], [0, 0, 1, 1], [], []>} : vector<8x128xf32>, vector<128x128xf32>, vector<8x128xf32> -> vector<8x128xf32>
    %23 = arith.addf %21, %22 : vector<8x128xf32>
    %24 = arith.mulf %23, %18 : vector<8x128xf32>
    %25 = math.tanh %24 : vector<8x128xf32>
    %cst_12 = arith.constant 5.000000e-01 : f32
    %26 = vector.broadcast %cst_12 : f32 to vector<8x128xf32>
    %27 = arith.mulf %26, %25 : vector<8x128xf32>
    %cst_13 = arith.constant 5.000000e-01 : f32
    %28 = vector.broadcast %cst_13 : f32 to vector<8x128xf32>
    %29 = arith.addf %27, %28 : vector<8x128xf32>
    %30 = arith.select %15, %25, %29 : vector<8x128xi1>, vector<8x128xf32>
    %c96_i32_14 = arith.constant 96 : i32
    %31 = tpu.dynamic_rotate %30 by %c96_i32_14 dim 1 : vector<8x128xf32>, i32 -> vector<8x128xf32>
    %c64_i32_15 = arith.constant 64 : i32
    %32 = tpu.dynamic_rotate %30 by %c64_i32_15 dim 1 : vector<8x128xf32>, i32 -> vector<8x128xf32>
    %c32_i32 = arith.constant 32 : i32
    %33 = tpu.dynamic_rotate %30 by %c32_i32 dim 1 : vector<8x128xf32>, i32 -> vector<8x128xf32>
    %34 = arith.mulf %31, %20 : vector<8x128xf32>
    %35 = arith.mulf %30, %32 : vector<8x128xf32>
    %36 = arith.addf %34, %35 : vector<8x128xf32>
    %37 = math.tanh %36 : vector<8x128xf32>
    %38 = arith.mulf %33, %37 : vector<8x128xf32>
    %39 = vector.extract_strided_slice %8 {offsets = [8, 0], sizes = [8, 128], strides = [1, 1]} : vector<64x128xf32> to vector<8x128xf32>
    %cst_16 = arith.constant dense<0.000000e+00> : vector<8x128xf32>
    %40 = tpu.matmul %38, %9, %cst_16 {dimension_numbers = #tpu.dot_dimension_numbers<[1], [0], [0], [1], [0, 0, 1, 1], [], []>} : vector<8x128xf32>, vector<128x128xf32>, vector<8x128xf32> -> vector<8x128xf32>
    %41 = arith.addf %39, %40 : vector<8x128xf32>
    %42 = arith.mulf %41, %18 : vector<8x128xf32>
    %43 = math.tanh %42 : vector<8x128xf32>
    %cst_17 = arith.constant 5.000000e-01 : f32
    %44 = vector.broadcast %cst_17 : f32 to vector<8x128xf32>
    %45 = arith.mulf %44, %43 : vector<8x128xf32>
    %cst_18 = arith.constant 5.000000e-01 : f32
    %46 = vector.broadcast %cst_18 : f32 to vector<8x128xf32>
    %47 = arith.addf %45, %46 : vector<8x128xf32>
    %48 = arith.select %15, %43, %47 : vector<8x128xi1>, vector<8x128xf32>
    %c96_i32_19 = arith.constant 96 : i32
    %49 = tpu.dynamic_rotate %48 by %c96_i32_19 dim 1 : vector<8x128xf32>, i32 -> vector<8x128xf32>
    %c64_i32_20 = arith.constant 64 : i32
    %50 = tpu.dynamic_rotate %48 by %c64_i32_20 dim 1 : vector<8x128xf32>, i32 -> vector<8x128xf32>
    %c32_i32_21 = arith.constant 32 : i32
    %51 = tpu.dynamic_rotate %48 by %c32_i32_21 dim 1 : vector<8x128xf32>, i32 -> vector<8x128xf32>
    %52 = arith.mulf %49, %36 : vector<8x128xf32>
    %53 = arith.mulf %48, %50 : vector<8x128xf32>
    %54 = arith.addf %52, %53 : vector<8x128xf32>
    %55 = math.tanh %54 : vector<8x128xf32>
    %56 = arith.mulf %51, %55 : vector<8x128xf32>
    %57 = vector.extract_strided_slice %8 {offsets = [16, 0], sizes = [8, 128], strides = [1, 1]} : vector<64x128xf32> to vector<8x128xf32>
    %cst_22 = arith.constant dense<0.000000e+00> : vector<8x128xf32>
    %58 = tpu.matmul %56, %9, %cst_22 {dimension_numbers = #tpu.dot_dimension_numbers<[1], [0], [0], [1], [0, 0, 1, 1], [], []>} : vector<8x128xf32>, vector<128x128xf32>, vector<8x128xf32> -> vector<8x128xf32>
    %59 = arith.addf %57, %58 : vector<8x128xf32>
    %60 = arith.mulf %59, %18 : vector<8x128xf32>
    %61 = math.tanh %60 : vector<8x128xf32>
    %cst_23 = arith.constant 5.000000e-01 : f32
    %62 = vector.broadcast %cst_23 : f32 to vector<8x128xf32>
    %63 = arith.mulf %62, %61 : vector<8x128xf32>
    %cst_24 = arith.constant 5.000000e-01 : f32
    %64 = vector.broadcast %cst_24 : f32 to vector<8x128xf32>
    %65 = arith.addf %63, %64 : vector<8x128xf32>
    %66 = arith.select %15, %61, %65 : vector<8x128xi1>, vector<8x128xf32>
    %c96_i32_25 = arith.constant 96 : i32
    %67 = tpu.dynamic_rotate %66 by %c96_i32_25 dim 1 : vector<8x128xf32>, i32 -> vector<8x128xf32>
    %c64_i32_26 = arith.constant 64 : i32
    %68 = tpu.dynamic_rotate %66 by %c64_i32_26 dim 1 : vector<8x128xf32>, i32 -> vector<8x128xf32>
    %c32_i32_27 = arith.constant 32 : i32
    %69 = tpu.dynamic_rotate %66 by %c32_i32_27 dim 1 : vector<8x128xf32>, i32 -> vector<8x128xf32>
    %70 = arith.mulf %67, %54 : vector<8x128xf32>
    %71 = arith.mulf %66, %68 : vector<8x128xf32>
    %72 = arith.addf %70, %71 : vector<8x128xf32>
    %73 = math.tanh %72 : vector<8x128xf32>
    %74 = arith.mulf %69, %73 : vector<8x128xf32>
    %75 = vector.extract_strided_slice %8 {offsets = [24, 0], sizes = [8, 128], strides = [1, 1]} : vector<64x128xf32> to vector<8x128xf32>
    %cst_28 = arith.constant dense<0.000000e+00> : vector<8x128xf32>
    %76 = tpu.matmul %74, %9, %cst_28 {dimension_numbers = #tpu.dot_dimension_numbers<[1], [0], [0], [1], [0, 0, 1, 1], [], []>} : vector<8x128xf32>, vector<128x128xf32>, vector<8x128xf32> -> vector<8x128xf32>
    %77 = arith.addf %75, %76 : vector<8x128xf32>
    %78 = arith.mulf %77, %18 : vector<8x128xf32>
    %79 = math.tanh %78 : vector<8x128xf32>
    %cst_29 = arith.constant 5.000000e-01 : f32
    %80 = vector.broadcast %cst_29 : f32 to vector<8x128xf32>
    %81 = arith.mulf %80, %79 : vector<8x128xf32>
    %cst_30 = arith.constant 5.000000e-01 : f32
    %82 = vector.broadcast %cst_30 : f32 to vector<8x128xf32>
    %83 = arith.addf %81, %82 : vector<8x128xf32>
    %84 = arith.select %15, %79, %83 : vector<8x128xi1>, vector<8x128xf32>
    %c96_i32_31 = arith.constant 96 : i32
    %85 = tpu.dynamic_rotate %84 by %c96_i32_31 dim 1 : vector<8x128xf32>, i32 -> vector<8x128xf32>
    %c64_i32_32 = arith.constant 64 : i32
    %86 = tpu.dynamic_rotate %84 by %c64_i32_32 dim 1 : vector<8x128xf32>, i32 -> vector<8x128xf32>
    %c32_i32_33 = arith.constant 32 : i32
    %87 = tpu.dynamic_rotate %84 by %c32_i32_33 dim 1 : vector<8x128xf32>, i32 -> vector<8x128xf32>
    %88 = arith.mulf %85, %72 : vector<8x128xf32>
    %89 = arith.mulf %84, %86 : vector<8x128xf32>
    %90 = arith.addf %88, %89 : vector<8x128xf32>
    %91 = math.tanh %90 : vector<8x128xf32>
    %92 = arith.mulf %87, %91 : vector<8x128xf32>
    %93 = vector.extract_strided_slice %8 {offsets = [32, 0], sizes = [8, 128], strides = [1, 1]} : vector<64x128xf32> to vector<8x128xf32>
    %cst_34 = arith.constant dense<0.000000e+00> : vector<8x128xf32>
    %94 = tpu.matmul %92, %9, %cst_34 {dimension_numbers = #tpu.dot_dimension_numbers<[1], [0], [0], [1], [0, 0, 1, 1], [], []>} : vector<8x128xf32>, vector<128x128xf32>, vector<8x128xf32> -> vector<8x128xf32>
    %95 = arith.addf %93, %94 : vector<8x128xf32>
    %96 = arith.mulf %95, %18 : vector<8x128xf32>
    %97 = math.tanh %96 : vector<8x128xf32>
    %cst_35 = arith.constant 5.000000e-01 : f32
    %98 = vector.broadcast %cst_35 : f32 to vector<8x128xf32>
    %99 = arith.mulf %98, %97 : vector<8x128xf32>
    %cst_36 = arith.constant 5.000000e-01 : f32
    %100 = vector.broadcast %cst_36 : f32 to vector<8x128xf32>
    %101 = arith.addf %99, %100 : vector<8x128xf32>
    %102 = arith.select %15, %97, %101 : vector<8x128xi1>, vector<8x128xf32>
    %c96_i32_37 = arith.constant 96 : i32
    %103 = tpu.dynamic_rotate %102 by %c96_i32_37 dim 1 : vector<8x128xf32>, i32 -> vector<8x128xf32>
    %c64_i32_38 = arith.constant 64 : i32
    %104 = tpu.dynamic_rotate %102 by %c64_i32_38 dim 1 : vector<8x128xf32>, i32 -> vector<8x128xf32>
    %c32_i32_39 = arith.constant 32 : i32
    %105 = tpu.dynamic_rotate %102 by %c32_i32_39 dim 1 : vector<8x128xf32>, i32 -> vector<8x128xf32>
    %106 = arith.mulf %103, %90 : vector<8x128xf32>
    %107 = arith.mulf %102, %104 : vector<8x128xf32>
    %108 = arith.addf %106, %107 : vector<8x128xf32>
    %109 = math.tanh %108 : vector<8x128xf32>
    %110 = arith.mulf %105, %109 : vector<8x128xf32>
    %111 = vector.extract_strided_slice %8 {offsets = [40, 0], sizes = [8, 128], strides = [1, 1]} : vector<64x128xf32> to vector<8x128xf32>
    %cst_40 = arith.constant dense<0.000000e+00> : vector<8x128xf32>
    %112 = tpu.matmul %110, %9, %cst_40 {dimension_numbers = #tpu.dot_dimension_numbers<[1], [0], [0], [1], [0, 0, 1, 1], [], []>} : vector<8x128xf32>, vector<128x128xf32>, vector<8x128xf32> -> vector<8x128xf32>
    %113 = arith.addf %111, %112 : vector<8x128xf32>
    %114 = arith.mulf %113, %18 : vector<8x128xf32>
    %115 = math.tanh %114 : vector<8x128xf32>
    %cst_41 = arith.constant 5.000000e-01 : f32
    %116 = vector.broadcast %cst_41 : f32 to vector<8x128xf32>
    %117 = arith.mulf %116, %115 : vector<8x128xf32>
    %cst_42 = arith.constant 5.000000e-01 : f32
    %118 = vector.broadcast %cst_42 : f32 to vector<8x128xf32>
    %119 = arith.addf %117, %118 : vector<8x128xf32>
    %120 = arith.select %15, %115, %119 : vector<8x128xi1>, vector<8x128xf32>
    %c96_i32_43 = arith.constant 96 : i32
    %121 = tpu.dynamic_rotate %120 by %c96_i32_43 dim 1 : vector<8x128xf32>, i32 -> vector<8x128xf32>
    %c64_i32_44 = arith.constant 64 : i32
    %122 = tpu.dynamic_rotate %120 by %c64_i32_44 dim 1 : vector<8x128xf32>, i32 -> vector<8x128xf32>
    %c32_i32_45 = arith.constant 32 : i32
    %123 = tpu.dynamic_rotate %120 by %c32_i32_45 dim 1 : vector<8x128xf32>, i32 -> vector<8x128xf32>
    %124 = arith.mulf %121, %108 : vector<8x128xf32>
    %125 = arith.mulf %120, %122 : vector<8x128xf32>
    %126 = arith.addf %124, %125 : vector<8x128xf32>
    %127 = math.tanh %126 : vector<8x128xf32>
    %128 = arith.mulf %123, %127 : vector<8x128xf32>
    %129 = vector.extract_strided_slice %8 {offsets = [48, 0], sizes = [8, 128], strides = [1, 1]} : vector<64x128xf32> to vector<8x128xf32>
    %cst_46 = arith.constant dense<0.000000e+00> : vector<8x128xf32>
    %130 = tpu.matmul %128, %9, %cst_46 {dimension_numbers = #tpu.dot_dimension_numbers<[1], [0], [0], [1], [0, 0, 1, 1], [], []>} : vector<8x128xf32>, vector<128x128xf32>, vector<8x128xf32> -> vector<8x128xf32>
    %131 = arith.addf %129, %130 : vector<8x128xf32>
    %132 = arith.mulf %131, %18 : vector<8x128xf32>
    %133 = math.tanh %132 : vector<8x128xf32>
    %cst_47 = arith.constant 5.000000e-01 : f32
    %134 = vector.broadcast %cst_47 : f32 to vector<8x128xf32>
    %135 = arith.mulf %134, %133 : vector<8x128xf32>
    %cst_48 = arith.constant 5.000000e-01 : f32
    %136 = vector.broadcast %cst_48 : f32 to vector<8x128xf32>
    %137 = arith.addf %135, %136 : vector<8x128xf32>
    %138 = arith.select %15, %133, %137 : vector<8x128xi1>, vector<8x128xf32>
    %c96_i32_49 = arith.constant 96 : i32
    %139 = tpu.dynamic_rotate %138 by %c96_i32_49 dim 1 : vector<8x128xf32>, i32 -> vector<8x128xf32>
    %c64_i32_50 = arith.constant 64 : i32
    %140 = tpu.dynamic_rotate %138 by %c64_i32_50 dim 1 : vector<8x128xf32>, i32 -> vector<8x128xf32>
    %c32_i32_51 = arith.constant 32 : i32
    %141 = tpu.dynamic_rotate %138 by %c32_i32_51 dim 1 : vector<8x128xf32>, i32 -> vector<8x128xf32>
    %142 = arith.mulf %139, %126 : vector<8x128xf32>
    %143 = arith.mulf %138, %140 : vector<8x128xf32>
    %144 = arith.addf %142, %143 : vector<8x128xf32>
    %145 = math.tanh %144 : vector<8x128xf32>
    %146 = arith.mulf %141, %145 : vector<8x128xf32>
    %147 = vector.extract_strided_slice %8 {offsets = [56, 0], sizes = [8, 128], strides = [1, 1]} : vector<64x128xf32> to vector<8x128xf32>
    %cst_52 = arith.constant dense<0.000000e+00> : vector<8x128xf32>
    %148 = tpu.matmul %146, %9, %cst_52 {dimension_numbers = #tpu.dot_dimension_numbers<[1], [0], [0], [1], [0, 0, 1, 1], [], []>} : vector<8x128xf32>, vector<128x128xf32>, vector<8x128xf32> -> vector<8x128xf32>
    %149 = arith.addf %147, %148 : vector<8x128xf32>
    %150 = arith.mulf %149, %18 : vector<8x128xf32>
    %151 = math.tanh %150 : vector<8x128xf32>
    %cst_53 = arith.constant 5.000000e-01 : f32
    %152 = vector.broadcast %cst_53 : f32 to vector<8x128xf32>
    %153 = arith.mulf %152, %151 : vector<8x128xf32>
    %cst_54 = arith.constant 5.000000e-01 : f32
    %154 = vector.broadcast %cst_54 : f32 to vector<8x128xf32>
    %155 = arith.addf %153, %154 : vector<8x128xf32>
    %156 = arith.select %15, %151, %155 : vector<8x128xi1>, vector<8x128xf32>
    %c96_i32_55 = arith.constant 96 : i32
    %157 = tpu.dynamic_rotate %156 by %c96_i32_55 dim 1 : vector<8x128xf32>, i32 -> vector<8x128xf32>
    %c64_i32_56 = arith.constant 64 : i32
    %158 = tpu.dynamic_rotate %156 by %c64_i32_56 dim 1 : vector<8x128xf32>, i32 -> vector<8x128xf32>
    %c32_i32_57 = arith.constant 32 : i32
    %159 = tpu.dynamic_rotate %156 by %c32_i32_57 dim 1 : vector<8x128xf32>, i32 -> vector<8x128xf32>
    %160 = arith.mulf %157, %144 : vector<8x128xf32>
    %161 = arith.mulf %156, %158 : vector<8x128xf32>
    %162 = arith.addf %160, %161 : vector<8x128xf32>
    %163 = math.tanh %162 : vector<8x128xf32>
    %164 = arith.mulf %159, %163 : vector<8x128xf32>
    %c0_58 = arith.constant 0 : index
    %c0_59 = arith.constant 0 : index
    %165 = vector.load %arg3[%c0_58, %c0_59] : memref<128x128xf32, #tpu.memory_space<vmem>>, vector<128x128xf32>
    %cst_60 = arith.constant dense<0.000000e+00> : vector<8x128xf32>
    %166 = tpu.matmul %164, %165, %cst_60 {dimension_numbers = #tpu.dot_dimension_numbers<[1], [0], [0], [1], [0, 0, 1, 1], [], []>} : vector<8x128xf32>, vector<128x128xf32>, vector<8x128xf32> -> vector<8x128xf32>
    %c0_61 = arith.constant 0 : index
    %c0_62 = arith.constant 0 : index
    %167 = vector.load %arg4[%c0_61, %c0_62] : memref<1x128xf32, #tpu.memory_space<vmem>>, vector<1x128xf32>
    %168 = vector.broadcast %167 : vector<1x128xf32> to vector<8x128xf32>
    %169 = arith.addf %166, %168 : vector<8x128xf32>
    %c0_63 = arith.constant 0 : index
    %c0_64 = arith.constant 0 : index
    %170 = vector.load %arg5[%c0_63, %c0_64] : memref<8x128xf32, #tpu.memory_space<vmem>>, vector<8x128xf32>
    tpu.vector_store %arg5[%c0_63, %c0_64], %169 {strides = array<i32>} : memref<8x128xf32, #tpu.memory_space<vmem>>, vector<8x128xf32>,
    return
  }
}

</mosaic_0001>

<llo_original>
// kernel: instruction_classifier_forward.1
$region0: #{instruction_classifier_forward.1}
  #allocation0 [shape = 'u32[]', space=smem, size = 0x4, offset = 0x4, fixed_abs, tag = 'smem constant byte address 0x4 - core index']
  #allocation1 [shape = 'u32[144,128]{1,0:T(1,128)}', space=vmem, size = 0x12000, scoped, tag = 'internal scratch']
  %s0 = inlined_call_operand.vmem [shape: s32[64,1], index: 0, kind: input, shape index: {}]
  %s1 = inlined_call_operand.vmem [shape: f32[128,128], index: 1, kind: input, shape index: {}]
  %s2 = inlined_call_operand.vmem [shape: f32[128,128], index: 2, kind: input, shape index: {}]
  %s3 = inlined_call_operand.vmem [shape: f32[128,128], index: 3, kind: input, shape index: {}]
  %s4 = inlined_call_operand.vmem [shape: f32[1,128], index: 4, kind: input, shape index: {}]
  %s5 = inlined_call_operand.vmem [shape: f32[8,128], index: 5, kind: output, shape index: {}]
  %s6 = sld [smem:[#allocation0]]
  $region30: #{instruction_classifier_forward.1} parent=0
    _
  %s8 = ssub.s32 1, %s6
  %s9 = scalar_select 0, %s8, %s6
  // Predicated region
  $region2: #{instruction_classifier_forward.1} parent=0 // pred_check
    _
  $region3: #{instruction_classifier_forward.1} parent=0 // pred_check_branch
    %11 = sbr.rel (0) target = $region5
  $region4: #{instruction_classifier_forward.1} parent=0 // pred_region
    _
  $region5: #{instruction_classifier_forward.1} parent=0 // pred_fallthru
    _
  // Predicated region
  $region6: #{instruction_classifier_forward.1} parent=0 // pred_check
    _
  $region7: #{instruction_classifier_forward.1} parent=0 // pred_check_branch
    %13 = sbr.rel (0) target = $region9
  $region8: #{instruction_classifier_forward.1} parent=0 // pred_region
    _
  $region9: #{instruction_classifier_forward.1} parent=0 // pred_fallthru
    _
  // Predicated region
  $region10: #{instruction_classifier_forward.1} parent=0 // pred_check
    _
  $region11: #{instruction_classifier_forward.1} parent=0 // pred_check_branch
    %15 = sbr.rel (0) target = $region13
  $region12: #{instruction_classifier_forward.1} parent=0 // pred_region
    _
  $region13: #{instruction_classifier_forward.1} parent=0 // pred_fallthru
    _
  // Predicated region
  $region14: #{instruction_classifier_forward.1} parent=0 // pred_check
    _
  $region15: #{instruction_classifier_forward.1} parent=0 // pred_check_branch
    %17 = sbr.rel (0) target = $region17
  $region16: #{instruction_classifier_forward.1} parent=0 // pred_region
    _
  $region17: #{instruction_classifier_forward.1} parent=0 // pred_fallthru
    _
  // Predicated region
  $region18: #{instruction_classifier_forward.1} parent=0 // pred_check
    _
  $region19: #{instruction_classifier_forward.1} parent=0 // pred_check_branch
    %19 = sbr.rel (0) target = $region21
  $region20: #{instruction_classifier_forward.1} parent=0 // pred_region
    _
  $region21: #{instruction_classifier_forward.1} parent=0 // pred_fallthru
    _
  %v20 = vlaneseq
  %v21 = vand.u32 %v20, 127
  %v22 = vld [vmem:[%s0] sm:$0xff]
  %v23 = vld [vmem:[%s0 + $0x8] sm:$0xff]
  %v24 = vld [vmem:[%s0 + $0x10] sm:$0xff]
  %v25 = vld [vmem:[%s0 + $0x18] sm:$0xff]
  %v26 = vld [vmem:[%s0 + $0x20] sm:$0xff]
  %v27 = vld [vmem:[%s0 + $0x28] sm:$0xff]
  %v28 = vld [vmem:[%s0 + $0x30] sm:$0xff]
  %v29 = vld [vmem:[%s0 + $0x38] sm:$0xff]
  %30 = vset.pattern.permute.xlu0 0
  %31 = vperm.xlu0 %30, %v22
  %v32 = vpop.permute.xlu0 %31
  %33 = vset.pattern.permute.xlu0 0
  %34 = vperm.xlu0 %33, %v23
  %v35 = vpop.permute.xlu0 %34
  %36 = vset.pattern.permute.xlu0 0
  %37 = vperm.xlu0 %36, %v24
  %v38 = vpop.permute.xlu0 %37
  %39 = vset.pattern.permute.xlu0 0
  %40 = vperm.xlu0 %39, %v25
  %v41 = vpop.permute.xlu0 %40
  %42 = vset.pattern.permute.xlu0 0
  %43 = vperm.xlu0 %42, %v26
  %v44 = vpop.permute.xlu0 %43
  %45 = vset.pattern.permute.xlu0 0
  %46 = vperm.xlu0 %45, %v27
  %v47 = vpop.permute.xlu0 %46
  %48 = vset.pattern.permute.xlu0 0
  %49 = vperm.xlu0 %48, %v28
  %v50 = vpop.permute.xlu0 %49
  %51 = vset.pattern.permute.xlu0 0
  %52 = vperm.xlu0 %51, %v29
  %v53 = vpop.permute.xlu0 %52
  %vm54 = vcmp.eq.s32.totalorder %v21, %v32
  %vm55 = vcmp.eq.s32.totalorder %v21, %v35
  %vm56 = vcmp.eq.s32.totalorder %v21, %v38
  %vm57 = vcmp.eq.s32.totalorder %v21, %v41
  %vm58 = vcmp.eq.s32.totalorder %v21, %v44
  %vm59 = vcmp.eq.s32.totalorder %v21, %v47
  %vm60 = vcmp.eq.s32.totalorder %v21, %v50
  %vm61 = vcmp.eq.s32.totalorder %v21, %v53
  %v62 = vsel %vm54, 1.0, 0.0
  %v63 = vsel %vm55, 1.0, 0.0
  %v64 = vsel %vm56, 1.0, 0.0
  %v65 = vsel %vm57, 1.0, 0.0
  %v66 = vsel %vm58, 1.0, 0.0
  %v67 = vsel %vm59, 1.0, 0.0
  %v68 = vsel %vm60, 1.0, 0.0
  %v69 = vsel %vm61, 1.0, 0.0
  %v70 = vld [vmem:[%s1] sm:$0xff]
  %v71 = vld [vmem:[%s1 + $0x8] sm:$0xff]
  %v72 = vld [vmem:[%s1 + $0x10] sm:$0xff]
  %v73 = vld [vmem:[%s1 + $0x18] sm:$0xff]
  %v74 = vld [vmem:[%s1 + $0x20] sm:$0xff]
  %v75 = vld [vmem:[%s1 + $0x28] sm:$0xff]
  %v76 = vld [vmem:[%s1 + $0x30] sm:$0xff]
  %v77 = vld [vmem:[%s1 + $0x38] sm:$0xff]
  %v78 = vld [vmem:[%s1 + $0x40] sm:$0xff]
  %v79 = vld [vmem:[%s1 + $0x48] sm:$0xff]
  %v80 = vld [vmem:[%s1 + $0x50] sm:$0xff]
  %v81 = vld [vmem:[%s1 + $0x58] sm:$0xff]
  %v82 = vld [vmem:[%s1 + $0x60] sm:$0xff]
  %v83 = vld [vmem:[%s1 + $0x68] sm:$0xff]
  %v84 = vld [vmem:[%s1 + $0x70] sm:$0xff]
  %v85 = vld [vmem:[%s1 + $0x78] sm:$0xff]
  %86 = vmatprep.subr.mxu0 0.0
  %87 = vmatpush1.msra.mxu0 %v85
  %88 = vmatprep.subr.mxu0 0.0
  %89 = vmatpush1.msra.mxu0 %v84
  %90 = vmatprep.subr.mxu0 0.0
  %91 = vmatpush1.msra.mxu0 %v83
  %92 = vmatprep.subr.mxu0 0.0
  %93 = vmatpush1.msra.mxu0 %v82
  %94 = vmatprep.subr.mxu0 0.0
  %95 = vmatpush1.msra.mxu0 %v81
  %96 = vmatprep.subr.mxu0 0.0
  %97 = vmatpush1.msra.mxu0 %v80
  %98 = vmatprep.subr.mxu0 0.0
  %99 = vmatpush1.msra.mxu0 %v79
  %100 = vmatprep.subr.mxu0 0.0
  %101 = vmatpush1.msra.mxu0 %v78
  %102 = vmatprep.subr.mxu0 0.0
  %103 = vmatpush1.msra.mxu0 %v77
  %104 = vmatprep.subr.mxu0 0.0
  %105 = vmatpush1.msra.mxu0 %v76
  %106 = vmatprep.subr.mxu0 0.0
  %107 = vmatpush1.msra.mxu0 %v75
  %108 = vmatprep.subr.mxu0 0.0
  %109 = vmatpush1.msra.mxu0 %v74
  %110 = vmatprep.subr.mxu0 0.0
  %111 = vmatpush1.msra.mxu0 %v73
  %112 = vmatprep.subr.mxu0 0.0
  %113 = vmatpush1.msra.mxu0 %v72
  %114 = vmatprep.subr.mxu0 0.0
  %115 = vmatpush1.msra.mxu0 %v71
  %116 = vmatprep.subr.mxu0 0.0
  %117 = vmatpush1.msra.mxu0 %v70
  %118 = vmatprep.subr.mxu0 0.0
  %119 = vmatpush2.msra.mxu0 0.0
  %120 = vmatprep.subr.mxu0 0.0
  %121 = vmatpush2.msra.mxu0 0.0
  %122 = vmatprep.subr.mxu0 0.0
  %123 = vmatpush2.msra.mxu0 0.0
  %124 = vmatprep.subr.mxu0 0.0
  %125 = vmatpush2.msra.mxu0 0.0
  %126 = vmatprep.subr.mxu0 0.0
  %127 = vmatpush2.msra.mxu0 0.0
  %128 = vmatprep.subr.mxu0 0.0
  %129 = vmatpush2.msra.mxu0 0.0
  %130 = vmatprep.subr.mxu0 0.0
  %131 = vmatpush2.msra.mxu0 0.0
  %132 = vmatprep.subr.mxu0 0.0
  %133 = vmatpush2.msra.mxu0 0.0
  %134 = vmatprep.subr.mxu0 0.0
  %135 = vmatpush2.msra.mxu0 0.0
  %136 = vmatprep.subr.mxu0 0.0
  %137 = vmatpush2.msra.mxu0 0.0
  %138 = vmatprep.subr.mxu0 0.0
  %139 = vmatpush2.msra.mxu0 0.0
  %140 = vmatprep.subr.mxu0 0.0
  %141 = vmatpush2.msra.mxu0 0.0
  %142 = vmatprep.subr.mxu0 0.0
  %143 = vmatpush2.msra.mxu0 0.0
  %144 = vmatprep.subr.mxu0 0.0
  %145 = vmatpush2.msra.mxu0 0.0
  %146 = vmatprep.subr.mxu0 0.0
  %147 = vmatpush2.msra.mxu0 0.0
  %148 = vmatprep.subr.mxu0 0.0
  %149 = vmatpush2.msra.mxu0 0.0
  %150 = vmatprep.mubr.f32.mxu0 0.0
  %151 = vmatmul.mubr.f32.gmra.mxu0 %v62
  %v152 = vpop.f32.mrf.mxu0
  %v153 = vadd.f32 0.0, %v152
  %v154 = vpop.f32.mrf.mxu0
  %155 = vmatprep.mubr.f32.mxu0 0.0
  %156 = vmatmul.mubr.f32.gmra.mxu0 %v63
  %v157 = vpop.f32.mrf.mxu0
  %v158 = vadd.f32 0.0, %v157
  %v159 = vpop.f32.mrf.mxu0
  %160 = vmatprep.mubr.f32.mxu0 0.0
  %161 = vmatmul.mubr.f32.gmra.mxu0 %v64
  %v162 = vpop.f32.mrf.mxu0
  %v163 = vadd.f32 0.0, %v162
  %v164 = vpop.f32.mrf.mxu0
  %165 = vmatprep.mubr.f32.mxu0 0.0
  %166 = vmatmul.mubr.f32.gmra.mxu0 %v65
  %v167 = vpop.f32.mrf.mxu0
  %v168 = vadd.f32 0.0, %v167
  %v169 = vpop.f32.mrf.mxu0
  %170 = vmatprep.mubr.f32.mxu0 0.0
  %171 = vmatmul.mubr.f32.gmra.mxu0 %v66
  %v172 = vpop.f32.mrf.mxu0
  %v173 = vadd.f32 0.0, %v172
  %v174 = vpop.f32.mrf.mxu0
  %175 = vmatprep.mubr.f32.mxu0 0.0
  %176 = vmatmul.mubr.f32.gmra.mxu0 %v67
  %v177 = vpop.f32.mrf.mxu0
  %v178 = vadd.f32 0.0, %v177
  %v179 = vpop.f32.mrf.mxu0
  %180 = vmatprep.mubr.f32.mxu0 0.0
  %181 = vmatmul.mubr.f32.gmra.mxu0 %v68
  %v182 = vpop.f32.mrf.mxu0
  %v183 = vadd.f32 0.0, %v182
  %v184 = vpop.f32.mrf.mxu0
  %185 = vmatprep.mubr.f32.mxu0 0.0
  %186 = vmatmul.mubr.f32.gmra.mxu0 %v69
  %v187 = vpop.f32.mrf.mxu0
  %v188 = vadd.f32 0.0, %v187
  %v189 = vpop.f32.mrf.mxu0
  %190 = vdwg.mxu0
  %v191 = vld [vmem:[%s2] sm:$0xff]
  %v192 = vld [vmem:[%s2 + $0x8] sm:$0xff]
  %v193 = vld [vmem:[%s2 + $0x10] sm:$0xff]
  %v194 = vld [vmem:[%s2 + $0x18] sm:$0xff]
  %v195 = vld [vmem:[%s2 + $0x20] sm:$0xff]
  %v196 = vld [vmem:[%s2 + $0x28] sm:$0xff]
  %v197 = vld [vmem:[%s2 + $0x30] sm:$0xff]
  %v198 = vld [vmem:[%s2 + $0x38] sm:$0xff]
  %v199 = vld [vmem:[%s2 + $0x40] sm:$0xff]
  %v200 = vld [vmem:[%s2 + $0x48] sm:$0xff]
  %v201 = vld [vmem:[%s2 + $0x50] sm:$0xff]
  %v202 = vld [vmem:[%s2 + $0x58] sm:$0xff]
  %v203 = vld [vmem:[%s2 + $0x60] sm:$0xff]
  %v204 = vld [vmem:[%s2 + $0x68] sm:$0xff]
  %v205 = vld [vmem:[%s2 + $0x70] sm:$0xff]
  %v206 = vld [vmem:[%s2 + $0x78] sm:$0xff]
  %vm207 = vcmp.ge.s32.totalorder %v21, 64
  %vm208 = vcmp.lt.s32.totalorder %v21, 96
  %vm209 = vmand %vm207, %vm208
  %v210 = vsel %vm209, 1.0, 0.5
  %211 = vmatprep.subr.mxu0 0.0
  %212 = vmatpush1.msra.mxu0 %v206
  %213 = vmatprep.subr.mxu0 0.0
  %214 = vmatpush1.msra.mxu0 %v205
  %215 = vmatprep.subr.mxu0 0.0
  %216 = vmatpush1.msra.mxu0 %v204
  %217 = vmatprep.subr.mxu0 0.0
  %218 = vmatpush1.msra.mxu0 %v203
  %219 = vmatprep.subr.mxu0 0.0
  %220 = vmatpush1.msra.mxu0 %v202
  %221 = vmatprep.subr.mxu0 0.0
  %222 = vmatpush1.msra.mxu0 %v201
  %223 = vmatprep.subr.mxu0 0.0
  %224 = vmatpush1.msra.mxu0 %v200
  %225 = vmatprep.subr.mxu0 0.0
  %226 = vmatpush1.msra.mxu0 %v199
  %227 = vmatprep.subr.mxu0 0.0
  %228 = vmatpush1.msra.mxu0 %v198
  %229 = vmatprep.subr.mxu0 0.0
  %230 = vmatpush1.msra.mxu0 %v197
  %231 = vmatprep.subr.mxu0 0.0
  %232 = vmatpush1.msra.mxu0 %v196
  %233 = vmatprep.subr.mxu0 0.0
  %234 = vmatpush1.msra.mxu0 %v195
  %235 = vmatprep.subr.mxu0 0.0
  %236 = vmatpush1.msra.mxu0 %v194
  %237 = vmatprep.subr.mxu0 0.0
  %238 = vmatpush1.msra.mxu0 %v193
  %239 = vmatprep.subr.mxu0 0.0
  %240 = vmatpush1.msra.mxu0 %v192
  %241 = vmatprep.subr.mxu0 0.0
  %242 = vmatpush1.msra.mxu0 %v191
  %243 = vmatprep.subr.mxu0 0.0
  %244 = vmatpush2.msra.mxu0 0.0
  %245 = vmatprep.subr.mxu0 0.0
  %246 = vmatpush2.msra.mxu0 0.0
  %247 = vmatprep.subr.mxu0 0.0
  %248 = vmatpush2.msra.mxu0 0.0
  %249 = vmatprep.subr.mxu0 0.0
  %250 = vmatpush2.msra.mxu0 0.0
  %251 = vmatprep.subr.mxu0 0.0
  %252 = vmatpush2.msra.mxu0 0.0
  %253 = vmatprep.subr.mxu0 0.0
  %254 = vmatpush2.msra.mxu0 0.0
  %255 = vmatprep.subr.mxu0 0.0
  %256 = vmatpush2.msra.mxu0 0.0
  %257 = vmatprep.subr.mxu0 0.0
  %258 = vmatpush2.msra.mxu0 0.0
  %259 = vmatprep.subr.mxu0 0.0
  %260 = vmatpush2.msra.mxu0 0.0
  %261 = vmatprep.subr.mxu0 0.0
  %262 = vmatpush2.msra.mxu0 0.0
  %263 = vmatprep.subr.mxu0 0.0
  %264 = vmatpush2.msra.mxu0 0.0
  %265 = vmatprep.subr.mxu0 0.0
  %266 = vmatpush2.msra.mxu0 0.0
  %267 = vmatprep.subr.mxu0 0.0
  %268 = vmatpush2.msra.mxu0 0.0
  %269 = vmatprep.subr.mxu0 0.0
  %270 = vmatpush2.msra.mxu0 0.0
  %271 = vmatprep.subr.mxu0 0.0
  %272 = vmatpush2.msra.mxu0 0.0
  %273 = vmatprep.subr.mxu0 0.0
  %274 = vmatpush2.msra.mxu0 0.0
  %275 = vmatprep.mubr.f32.mxu0 0.0
  %276 = vmatmul.mubr.f32.gmra.mxu0 0.0
  %v277 = vpop.f32.mrf.mxu0
  %v278 = vadd.f32 0.0, %v277
  %v279 = vpop.f32.mrf.mxu0
  %280 = vdwg.mxu0
  %v281 = vadd.f32 %v153, %v278
  %v282 = vmul.f32 %v281, %v210
  %v283 = vtanh.pop %v282
  %v284 = vmul.f32 %v283, 0.5
  %v285 = vadd.f32 %v284, 0.5
  %v286 = vsel %vm209, %v283, %v285
  %287 = vrot.lane.b32.xlu0 %v286, 96
  %v288 = vpop.permute.xlu0 %287
  %289 = vrot.lane.b32.xlu0 %v286, 64
  %v290 = vpop.permute.xlu0 %289
  %291 = vrot.lane.b32.xlu0 %v286, 32
  %v292 = vpop.permute.xlu0 %291
  %v293 = vmul.f32 %v288, 0.0
  %v294 = vmul.f32 %v286, %v290
  %v295 = vadd.f32 %v293, %v294
  %v296 = vtanh.pop %v295
  %v297 = vmul.f32 %v292, %v296
  %298 = vmatprep.subr.mxu0 0.0
  %299 = vmatpush1.msra.mxu0 %v206
  %300 = vmatprep.subr.mxu0 0.0
  %301 = vmatpush1.msra.mxu0 %v205
  %302 = vmatprep.subr.mxu0 0.0
  %303 = vmatpush1.msra.mxu0 %v204
  %304 = vmatprep.subr.mxu0 0.0
  %305 = vmatpush1.msra.mxu0 %v203
  %306 = vmatprep.subr.mxu0 0.0
  %307 = vmatpush1.msra.mxu0 %v202
  %308 = vmatprep.subr.mxu0 0.0
  %309 = vmatpush1.msra.mxu0 %v201
  %310 = vmatprep.subr.mxu0 0.0
  %311 = vmatpush1.msra.mxu0 %v200
  %312 = vmatprep.subr.mxu0 0.0
  %313 = vmatpush1.msra.mxu0 %v199
  %314 = vmatprep.subr.mxu0 0.0
  %315 = vmatpush1.msra.mxu0 %v198
  %316 = vmatprep.subr.mxu0 0.0
  %317 = vmatpush1.msra.mxu0 %v197
  %318 = vmatprep.subr.mxu0 0.0
  %319 = vmatpush1.msra.mxu0 %v196
  %320 = vmatprep.subr.mxu0 0.0
  %321 = vmatpush1.msra.mxu0 %v195
  %322 = vmatprep.subr.mxu0 0.0
  %323 = vmatpush1.msra.mxu0 %v194
  %324 = vmatprep.subr.mxu0 0.0
  %325 = vmatpush1.msra.mxu0 %v193
  %326 = vmatprep.subr.mxu0 0.0
  %327 = vmatpush1.msra.mxu0 %v192
  %328 = vmatprep.subr.mxu0 0.0
  %329 = vmatpush1.msra.mxu0 %v191
  %330 = vmatprep.subr.mxu0 0.0
  %331 = vmatpush2.msra.mxu0 0.0
  %332 = vmatprep.subr.mxu0 0.0
  %333 = vmatpush2.msra.mxu0 0.0
  %334 = vmatprep.subr.mxu0 0.0
  %335 = vmatpush2.msra.mxu0 0.0
  %336 = vmatprep.subr.mxu0 0.0
  %337 = vmatpush2.msra.mxu0 0.0
  %338 = vmatprep.subr.mxu0 0.0
  %339 = vmatpush2.msra.mxu0 0.0
  %340 = vmatprep.subr.mxu0 0.0
  %341 = vmatpush2.msra.mxu0 0.0
  %342 = vmatprep.subr.mxu0 0.0
  %343 = vmatpush2.msra.mxu0 0.0
  %344 = vmatprep.subr.mxu0 0.0
  %345 = vmatpush2.msra.mxu0 0.0
  %346 = vmatprep.subr.mxu0 0.0
  %347 = vmatpush2.msra.mxu0 0.0
  %348 = vmatprep.subr.mxu0 0.0
  %349 = vmatpush2.msra.mxu0 0.0
  %350 = vmatprep.subr.mxu0 0.0
  %351 = vmatpush2.msra.mxu0 0.0
  %352 = vmatprep.subr.mxu0 0.0
  %353 = vmatpush2.msra.mxu0 0.0
  %354 = vmatprep.subr.mxu0 0.0
  %355 = vmatpush2.msra.mxu0 0.0
  %356 = vmatprep.subr.mxu0 0.0
  %357 = vmatpush2.msra.mxu0 0.0
  %358 = vmatprep.subr.mxu0 0.0
  %359 = vmatpush2.msra.mxu0 0.0
  %360 = vmatprep.subr.mxu0 0.0
  %361 = vmatpush2.msra.mxu0 0.0
  %362 = vmatprep.mubr.f32.mxu0 0.0
  %363 = vmatmul.mubr.f32.gmra.mxu0 %v297
  %v364 = vpop.f32.mrf.mxu0
  %v365 = vadd.f32 0.0, %v364
  %v366 = vpop.f32.mrf.mxu0
  %367 = vdwg.mxu0
  %v368 = vadd.f32 %v158, %v365
  %v369 = vmul.f32 %v368, %v210
  %v370 = vtanh.pop %v369
  %v371 = vmul.f32 %v370, 0.5
  %v372 = vadd.f32 %v371, 0.5
  %v373 = vsel %vm209, %v370, %v372
  %374 = vrot.lane.b32.xlu0 %v373, 96
  %v375 = vpop.permute.xlu0 %374
  %376 = vrot.lane.b32.xlu0 %v373, 64
  %v377 = vpop.permute.xlu0 %376
  %378 = vrot.lane.b32.xlu0 %v373, 32
  %v379 = vpop.permute.xlu0 %378
  %v380 = vmul.f32 %v375, %v295
  %v381 = vmul.f32 %v373, %v377
  %v382 = vadd.f32 %v380, %v381
  %v383 = vtanh.pop %v382
  %v384 = vmul.f32 %v379, %v383
  %385 = vmatprep.subr.mxu0 0.0
  %386 = vmatpush1.msra.mxu0 %v206
  %387 = vmatprep.subr.mxu0 0.0
  %388 = vmatpush1.msra.mxu0 %v205
  %389 = vmatprep.subr.mxu0 0.0
  %390 = vmatpush1.msra.mxu0 %v204
  %391 = vmatprep.subr.mxu0 0.0
  %392 = vmatpush1.msra.mxu0 %v203
  %393 = vmatprep.subr.mxu0 0.0
  %394 = vmatpush1.msra.mxu0 %v202
  %395 = vmatprep.subr.mxu0 0.0
  %396 = vmatpush1.msra.mxu0 %v201
  %397 = vmatprep.subr.mxu0 0.0
  %398 = vmatpush1.msra.mxu0 %v200
  %399 = vmatprep.subr.mxu0 0.0
  %400 = vmatpush1.msra.mxu0 %v199
  %401 = vmatprep.subr.mxu0 0.0
  %402 = vmatpush1.msra.mxu0 %v198
  %403 = vmatprep.subr.mxu0 0.0
  %404 = vmatpush1.msra.mxu0 %v197
  %405 = vmatprep.subr.mxu0 0.0
  %406 = vmatpush1.msra.mxu0 %v196
  %407 = vmatprep.subr.mxu0 0.0
  %408 = vmatpush1.msra.mxu0 %v195
  %409 = vmatprep.subr.mxu0 0.0
  %410 = vmatpush1.msra.mxu0 %v194
  %411 = vmatprep.subr.mxu0 0.0
  %412 = vmatpush1.msra.mxu0 %v193
  %413 = vmatprep.subr.mxu0 0.0
  %414 = vmatpush1.msra.mxu0 %v192
  %415 = vmatprep.subr.mxu0 0.0
  %416 = vmatpush1.msra.mxu0 %v191
  %417 = vmatprep.subr.mxu0 0.0
  %418 = vmatpush2.msra.mxu0 0.0
  %419 = vmatprep.subr.mxu0 0.0
  %420 = vmatpush2.msra.mxu0 0.0
  %421 = vmatprep.subr.mxu0 0.0
  %422 = vmatpush2.msra.mxu0 0.0
  %423 = vmatprep.subr.mxu0 0.0
  %424 = vmatpush2.msra.mxu0 0.0
  %425 = vmatprep.subr.mxu0 0.0
  %426 = vmatpush2.msra.mxu0 0.0
  %427 = vmatprep.subr.mxu0 0.0
  %428 = vmatpush2.msra.mxu0 0.0
  %429 = vmatprep.subr.mxu0 0.0
  %430 = vmatpush2.msra.mxu0 0.0
  %431 = vmatprep.subr.mxu0 0.0
  %432 = vmatpush2.msra.mxu0 0.0
  %433 = vmatprep.subr.mxu0 0.0
  %434 = vmatpush2.msra.mxu0 0.0
  %435 = vmatprep.subr.mxu0 0.0
  %436 = vmatpush2.msra.mxu0 0.0
  %437 = vmatprep.subr.mxu0 0.0
  %438 = vmatpush2.msra.mxu0 0.0
  %439 = vmatprep.subr.mxu0 0.0
  %440 = vmatpush2.msra.mxu0 0.0
  %441 = vmatprep.subr.mxu0 0.0
  %442 = vmatpush2.msra.mxu0 0.0
  %443 = vmatprep.subr.mxu0 0.0
  %444 = vmatpush2.msra.mxu0 0.0
  %445 = vmatprep.subr.mxu0 0.0
  %446 = vmatpush2.msra.mxu0 0.0
  %447 = vmatprep.subr.mxu0 0.0
  %448 = vmatpush2.msra.mxu0 0.0
  %449 = vmatprep.mubr.f32.mxu0 0.0
  %450 = vmatmul.mubr.f32.gmra.mxu0 %v384
  %v451 = vpop.f32.mrf.mxu0
  %v452 = vadd.f32 0.0, %v451
  %v453 = vpop.f32.mrf.mxu0
  %454 = vdwg.mxu0
  %v455 = vadd.f32 %v163, %v452
  %v456 = vmul.f32 %v455, %v210
  %v457 = vtanh.pop %v456
  %v458 = vmul.f32 %v457, 0.5
  %v459 = vadd.f32 %v458, 0.5
  %v460 = vsel %vm209, %v457, %v459
  %461 = vrot.lane.b32.xlu0 %v460, 96
  %v462 = vpop.permute.xlu0 %461
  %463 = vrot.lane.b32.xlu0 %v460, 64
  %v464 = vpop.permute.xlu0 %463
  %465 = vrot.lane.b32.xlu0 %v460, 32
  %v466 = vpop.permute.xlu0 %465
  %v467 = vmul.f32 %v462, %v382
  %v468 = vmul.f32 %v460, %v464
  %v469 = vadd.f32 %v467, %v468
  %v470 = vtanh.pop %v469
  %v471 = vmul.f32 %v466, %v470
  %472 = vmatprep.subr.mxu0 0.0
  %473 = vmatpush1.msra.mxu0 %v206
  %474 = vmatprep.subr.mxu0 0.0
  %475 = vmatpush1.msra.mxu0 %v205
  %476 = vmatprep.subr.mxu0 0.0
  %477 = vmatpush1.msra.mxu0 %v204
  %478 = vmatprep.subr.mxu0 0.0
  %479 = vmatpush1.msra.mxu0 %v203
  %480 = vmatprep.subr.mxu0 0.0
  %481 = vmatpush1.msra.mxu0 %v202
  %482 = vmatprep.subr.mxu0 0.0
  %483 = vmatpush1.msra.mxu0 %v201
  %484 = vmatprep.subr.mxu0 0.0
  %485 = vmatpush1.msra.mxu0 %v200
  %486 = vmatprep.subr.mxu0 0.0
  %487 = vmatpush1.msra.mxu0 %v199
  %488 = vmatprep.subr.mxu0 0.0
  %489 = vmatpush1.msra.mxu0 %v198
  %490 = vmatprep.subr.mxu0 0.0
  %491 = vmatpush1.msra.mxu0 %v197
  %492 = vmatprep.subr.mxu0 0.0
  %493 = vmatpush1.msra.mxu0 %v196
  %494 = vmatprep.subr.mxu0 0.0
  %495 = vmatpush1.msra.mxu0 %v195
  %496 = vmatprep.subr.mxu0 0.0
  %497 = vmatpush1.msra.mxu0 %v194
  %498 = vmatprep.subr.mxu0 0.0
  %499 = vmatpush1.msra.mxu0 %v193
  %500 = vmatprep.subr.mxu0 0.0
  %501 = vmatpush1.msra.mxu0 %v192
  %502 = vmatprep.subr.mxu0 0.0
  %503 = vmatpush1.msra.mxu0 %v191
  %504 = vmatprep.subr.mxu0 0.0
  %505 = vmatpush2.msra.mxu0 0.0
  %506 = vmatprep.subr.mxu0 0.0
  %507 = vmatpush2.msra.mxu0 0.0
  %508 = vmatprep.subr.mxu0 0.0
  %509 = vmatpush2.msra.mxu0 0.0
  %510 = vmatprep.subr.mxu0 0.0
  %511 = vmatpush2.msra.mxu0 0.0
  %512 = vmatprep.subr.mxu0 0.0
  %513 = vmatpush2.msra.mxu0 0.0
  %514 = vmatprep.subr.mxu0 0.0
  %515 = vmatpush2.msra.mxu0 0.0
  %516 = vmatprep.subr.mxu0 0.0
  %517 = vmatpush2.msra.mxu0 0.0
  %518 = vmatprep.subr.mxu0 0.0
  %519 = vmatpush2.msra.mxu0 0.0
  %520 = vmatprep.subr.mxu0 0.0
  %521 = vmatpush2.msra.mxu0 0.0
  %522 = vmatprep.subr.mxu0 0.0
  %523 = vmatpush2.msra.mxu0 0.0
  %524 = vmatprep.subr.mxu0 0.0
  %525 = vmatpush2.msra.mxu0 0.0
  %526 = vmatprep.subr.mxu0 0.0
  %527 = vmatpush2.msra.mxu0 0.0
  %528 = vmatprep.subr.mxu0 0.0
  %529 = vmatpush2.msra.mxu0 0.0
  %530 = vmatprep.subr.mxu0 0.0
  %531 = vmatpush2.msra.mxu0 0.0
  %532 = vmatprep.subr.mxu0 0.0
  %533 = vmatpush2.msra.mxu0 0.0
  %534 = vmatprep.subr.mxu0 0.0
  %535 = vmatpush2.msra.mxu0 0.0
  %536 = vmatprep.mubr.f32.mxu0 0.0
  %537 = vmatmul.mubr.f32.gmra.mxu0 %v471
  %v538 = vpop.f32.mrf.mxu0
  %v539 = vadd.f32 0.0, %v538
  %v540 = vpop.f32.mrf.mxu0
  %541 = vdwg.mxu0
  %v542 = vadd.f32 %v168, %v539
  %v543 = vmul.f32 %v542, %v210
  %v544 = vtanh.pop %v543
  %v545 = vmul.f32 %v544, 0.5
  %v546 = vadd.f32 %v545, 0.5
  %v547 = vsel %vm209, %v544, %v546
  %548 = vrot.lane.b32.xlu0 %v547, 96
  %v549 = vpop.permute.xlu0 %548
  %550 = vrot.lane.b32.xlu0 %v547, 64
  %v551 = vpop.permute.xlu0 %550
  %552 = vrot.lane.b32.xlu0 %v547, 32
  %v553 = vpop.permute.xlu0 %552
  %v554 = vmul.f32 %v549, %v469
  %v555 = vmul.f32 %v547, %v551
  %v556 = vadd.f32 %v554, %v555
  %v557 = vtanh.pop %v556
  %v558 = vmul.f32 %v553, %v557
  %559 = vmatprep.subr.mxu0 0.0
  %560 = vmatpush1.msra.mxu0 %v206
  %561 = vmatprep.subr.mxu0 0.0
  %562 = vmatpush1.msra.mxu0 %v205
  %563 = vmatprep.subr.mxu0 0.0
  %564 = vmatpush1.msra.mxu0 %v204
  %565 = vmatprep.subr.mxu0 0.0
  %566 = vmatpush1.msra.mxu0 %v203
  %567 = vmatprep.subr.mxu0 0.0
  %568 = vmatpush1.msra.mxu0 %v202
  %569 = vmatprep.subr.mxu0 0.0
  %570 = vmatpush1.msra.mxu0 %v201
  %571 = vmatprep.subr.mxu0 0.0
  %572 = vmatpush1.msra.mxu0 %v200
  %573 = vmatprep.subr.mxu0 0.0
  %574 = vmatpush1.msra.mxu0 %v199
  %575 = vmatprep.subr.mxu0 0.0
  %576 = vmatpush1.msra.mxu0 %v198
  %577 = vmatprep.subr.mxu0 0.0
  %578 = vmatpush1.msra.mxu0 %v197
  %579 = vmatprep.subr.mxu0 0.0
  %580 = vmatpush1.msra.mxu0 %v196
  %581 = vmatprep.subr.mxu0 0.0
  %582 = vmatpush1.msra.mxu0 %v195
  %583 = vmatprep.subr.mxu0 0.0
  %584 = vmatpush1.msra.mxu0 %v194
  %585 = vmatprep.subr.mxu0 0.0
  %586 = vmatpush1.msra.mxu0 %v193
  %587 = vmatprep.subr.mxu0 0.0
  %588 = vmatpush1.msra.mxu0 %v192
  %589 = vmatprep.subr.mxu0 0.0
  %590 = vmatpush1.msra.mxu0 %v191
  %591 = vmatprep.subr.mxu0 0.0
  %592 = vmatpush2.msra.mxu0 0.0
  %593 = vmatprep.subr.mxu0 0.0
  %594 = vmatpush2.msra.mxu0 0.0
  %595 = vmatprep.subr.mxu0 0.0
  %596 = vmatpush2.msra.mxu0 0.0
  %597 = vmatprep.subr.mxu0 0.0
  %598 = vmatpush2.msra.mxu0 0.0
  %599 = vmatprep.subr.mxu0 0.0
  %600 = vmatpush2.msra.mxu0 0.0
  %601 = vmatprep.subr.mxu0 0.0
  %602 = vmatpush2.msra.mxu0 0.0
  %603 = vmatprep.subr.mxu0 0.0
  %604 = vmatpush2.msra.mxu0 0.0
  %605 = vmatprep.subr.mxu0 0.0
  %606 = vmatpush2.msra.mxu0 0.0
  %607 = vmatprep.subr.mxu0 0.0
  %608 = vmatpush2.msra.mxu0 0.0
  %609 = vmatprep.subr.mxu0 0.0
  %610 = vmatpush2.msra.mxu0 0.0
  %611 = vmatprep.subr.mxu0 0.0
  %612 = vmatpush2.msra.mxu0 0.0
  %613 = vmatprep.subr.mxu0 0.0
  %614 = vmatpush2.msra.mxu0 0.0
  %615 = vmatprep.subr.mxu0 0.0
  %616 = vmatpush2.msra.mxu0 0.0
  %617 = vmatprep.subr.mxu0 0.0
  %618 = vmatpush2.msra.mxu0 0.0
  %619 = vmatprep.subr.mxu0 0.0
  %620 = vmatpush2.msra.mxu0 0.0
  %621 = vmatprep.subr.mxu0 0.0
  %622 = vmatpush2.msra.mxu0 0.0
  %623 = vmatprep.mubr.f32.mxu0 0.0
  %624 = vmatmul.mubr.f32.gmra.mxu0 %v558
  %v625 = vpop.f32.mrf.mxu0
  %v626 = vadd.f32 0.0, %v625
  %v627 = vpop.f32.mrf.mxu0
  %628 = vdwg.mxu0
  %v629 = vadd.f32 %v173, %v626
  %v630 = vmul.f32 %v629, %v210
  %v631 = vtanh.pop %v630
  %v632 = vmul.f32 %v631, 0.5
  %v633 = vadd.f32 %v632, 0.5
  %v634 = vsel %vm209, %v631, %v633
  %635 = vrot.lane.b32.xlu0 %v634, 96
  %v636 = vpop.permute.xlu0 %635
  %637 = vrot.lane.b32.xlu0 %v634, 64
  %v638 = vpop.permute.xlu0 %637
  %639 = vrot.lane.b32.xlu0 %v634, 32
  %v640 = vpop.permute.xlu0 %639
  %v641 = vmul.f32 %v636, %v556
  %v642 = vmul.f32 %v634, %v638
  %v643 = vadd.f32 %v641, %v642
  %v644 = vtanh.pop %v643
  %v645 = vmul.f32 %v640, %v644
  %646 = vmatprep.subr.mxu0 0.0
  %647 = vmatpush1.msra.mxu0 %v206
  %648 = vmatprep.subr.mxu0 0.0
  %649 = vmatpush1.msra.mxu0 %v205
  %650 = vmatprep.subr.mxu0 0.0
  %651 = vmatpush1.msra.mxu0 %v204
  %652 = vmatprep.subr.mxu0 0.0
  %653 = vmatpush1.msra.mxu0 %v203
  %654 = vmatprep.subr.mxu0 0.0
  %655 = vmatpush1.msra.mxu0 %v202
  %656 = vmatprep.subr.mxu0 0.0
  %657 = vmatpush1.msra.mxu0 %v201
  %658 = vmatprep.subr.mxu0 0.0
  %659 = vmatpush1.msra.mxu0 %v200
  %660 = vmatprep.subr.mxu0 0.0
  %661 = vmatpush1.msra.mxu0 %v199
  %662 = vmatprep.subr.mxu0 0.0
  %663 = vmatpush1.msra.mxu0 %v198
  %664 = vmatprep.subr.mxu0 0.0
  %665 = vmatpush1.msra.mxu0 %v197
  %666 = vmatprep.subr.mxu0 0.0
  %667 = vmatpush1.msra.mxu0 %v196
  %668 = vmatprep.subr.mxu0 0.0
  %669 = vmatpush1.msra.mxu0 %v195
  %670 = vmatprep.subr.mxu0 0.0
  %671 = vmatpush1.msra.mxu0 %v194
  %672 = vmatprep.subr.mxu0 0.0
  %673 = vmatpush1.msra.mxu0 %v193
  %674 = vmatprep.subr.mxu0 0.0
  %675 = vmatpush1.msra.mxu0 %v192
  %676 = vmatprep.subr.mxu0 0.0
  %677 = vmatpush1.msra.mxu0 %v191
  %678 = vmatprep.subr.mxu0 0.0
  %679 = vmatpush2.msra.mxu0 0.0
  %680 = vmatprep.subr.mxu0 0.0
  %681 = vmatpush2.msra.mxu0 0.0
  %682 = vmatprep.subr.mxu0 0.0
  %683 = vmatpush2.msra.mxu0 0.0
  %684 = vmatprep.subr.mxu0 0.0
  %685 = vmatpush2.msra.mxu0 0.0
  %686 = vmatprep.subr.mxu0 0.0
  %687 = vmatpush2.msra.mxu0 0.0
  %688 = vmatprep.subr.mxu0 0.0
  %689 = vmatpush2.msra.mxu0 0.0
  %690 = vmatprep.subr.mxu0 0.0
  %691 = vmatpush2.msra.mxu0 0.0
  %692 = vmatprep.subr.mxu0 0.0
  %693 = vmatpush2.msra.mxu0 0.0
  %694 = vmatprep.subr.mxu0 0.0
  %695 = vmatpush2.msra.mxu0 0.0
  %696 = vmatprep.subr.mxu0 0.0
  %697 = vmatpush2.msra.mxu0 0.0
  %698 = vmatprep.subr.mxu0 0.0
  %699 = vmatpush2.msra.mxu0 0.0
  %700 = vmatprep.subr.mxu0 0.0
  %701 = vmatpush2.msra.mxu0 0.0
  %702 = vmatprep.subr.mxu0 0.0
  %703 = vmatpush2.msra.mxu0 0.0
  %704 = vmatprep.subr.mxu0 0.0
  %705 = vmatpush2.msra.mxu0 0.0
  %706 = vmatprep.subr.mxu0 0.0
  %707 = vmatpush2.msra.mxu0 0.0
  %708 = vmatprep.subr.mxu0 0.0
  %709 = vmatpush2.msra.mxu0 0.0
  %710 = vmatprep.mubr.f32.mxu0 0.0
  %711 = vmatmul.mubr.f32.gmra.mxu0 %v645
  %v712 = vpop.f32.mrf.mxu0
  %v713 = vadd.f32 0.0, %v712
  %v714 = vpop.f32.mrf.mxu0
  %715 = vdwg.mxu0
  %v716 = vadd.f32 %v178, %v713
  %v717 = vmul.f32 %v716, %v210
  %v718 = vtanh.pop %v717
  %v719 = vmul.f32 %v718, 0.5
  %v720 = vadd.f32 %v719, 0.5
  %v721 = vsel %vm209, %v718, %v720
  %722 = vrot.lane.b32.xlu0 %v721, 96
  %v723 = vpop.permute.xlu0 %722
  %724 = vrot.lane.b32.xlu0 %v721, 64
  %v725 = vpop.permute.xlu0 %724
  %726 = vrot.lane.b32.xlu0 %v721, 32
  %v727 = vpop.permute.xlu0 %726
  %v728 = vmul.f32 %v723, %v643
  %v729 = vmul.f32 %v721, %v725
  %v730 = vadd.f32 %v728, %v729
  %v731 = vtanh.pop %v730
  %v732 = vmul.f32 %v727, %v731
  %733 = vmatprep.subr.mxu0 0.0
  %734 = vmatpush1.msra.mxu0 %v206
  %735 = vmatprep.subr.mxu0 0.0
  %736 = vmatpush1.msra.mxu0 %v205
  %737 = vmatprep.subr.mxu0 0.0
  %738 = vmatpush1.msra.mxu0 %v204
  %739 = vmatprep.subr.mxu0 0.0
  %740 = vmatpush1.msra.mxu0 %v203
  %741 = vmatprep.subr.mxu0 0.0
  %742 = vmatpush1.msra.mxu0 %v202
  %743 = vmatprep.subr.mxu0 0.0
  %744 = vmatpush1.msra.mxu0 %v201
  %745 = vmatprep.subr.mxu0 0.0
  %746 = vmatpush1.msra.mxu0 %v200
  %747 = vmatprep.subr.mxu0 0.0
  %748 = vmatpush1.msra.mxu0 %v199
  %749 = vmatprep.subr.mxu0 0.0
  %750 = vmatpush1.msra.mxu0 %v198
  %751 = vmatprep.subr.mxu0 0.0
  %752 = vmatpush1.msra.mxu0 %v197
  %753 = vmatprep.subr.mxu0 0.0
  %754 = vmatpush1.msra.mxu0 %v196
  %755 = vmatprep.subr.mxu0 0.0
  %756 = vmatpush1.msra.mxu0 %v195
  %757 = vmatprep.subr.mxu0 0.0
  %758 = vmatpush1.msra.mxu0 %v194
  %759 = vmatprep.subr.mxu0 0.0
  %760 = vmatpush1.msra.mxu0 %v193
  %761 = vmatprep.subr.mxu0 0.0
  %762 = vmatpush1.msra.mxu0 %v192
  %763 = vmatprep.subr.mxu0 0.0
  %764 = vmatpush1.msra.mxu0 %v191
  %765 = vmatprep.subr.mxu0 0.0
  %766 = vmatpush2.msra.mxu0 0.0
  %767 = vmatprep.subr.mxu0 0.0
  %768 = vmatpush2.msra.mxu0 0.0
  %769 = vmatprep.subr.mxu0 0.0
  %770 = vmatpush2.msra.mxu0 0.0
  %771 = vmatprep.subr.mxu0 0.0
  %772 = vmatpush2.msra.mxu0 0.0
  %773 = vmatprep.subr.mxu0 0.0
  %774 = vmatpush2.msra.mxu0 0.0
  %775 = vmatprep.subr.mxu0 0.0
  %776 = vmatpush2.msra.mxu0 0.0
  %777 = vmatprep.subr.mxu0 0.0
  %778 = vmatpush2.msra.mxu0 0.0
  %779 = vmatprep.subr.mxu0 0.0
  %780 = vmatpush2.msra.mxu0 0.0
  %781 = vmatprep.subr.mxu0 0.0
  %782 = vmatpush2.msra.mxu0 0.0
  %783 = vmatprep.subr.mxu0 0.0
  %784 = vmatpush2.msra.mxu0 0.0
  %785 = vmatprep.subr.mxu0 0.0
  %786 = vmatpush2.msra.mxu0 0.0
  %787 = vmatprep.subr.mxu0 0.0
  %788 = vmatpush2.msra.mxu0 0.0
  %789 = vmatprep.subr.mxu0 0.0
  %790 = vmatpush2.msra.mxu0 0.0
  %791 = vmatprep.subr.mxu0 0.0
  %792 = vmatpush2.msra.mxu0 0.0
  %793 = vmatprep.subr.mxu0 0.0
  %794 = vmatpush2.msra.mxu0 0.0
  %795 = vmatprep.subr.mxu0 0.0
  %796 = vmatpush2.msra.mxu0 0.0
  %797 = vmatprep.mubr.f32.mxu0 0.0
  %798 = vmatmul.mubr.f32.gmra.mxu0 %v732
  %v799 = vpop.f32.mrf.mxu0
  %v800 = vadd.f32 0.0, %v799
  %v801 = vpop.f32.mrf.mxu0
  %802 = vdwg.mxu0
  %v803 = vadd.f32 %v183, %v800
  %v804 = vmul.f32 %v803, %v210
  %v805 = vtanh.pop %v804
  %v806 = vmul.f32 %v805, 0.5
  %v807 = vadd.f32 %v806, 0.5
  %v808 = vsel %vm209, %v805, %v807
  %809 = vrot.lane.b32.xlu0 %v808, 96
  %v810 = vpop.permute.xlu0 %809
  %811 = vrot.lane.b32.xlu0 %v808, 64
  %v812 = vpop.permute.xlu0 %811
  %813 = vrot.lane.b32.xlu0 %v808, 32
  %v814 = vpop.permute.xlu0 %813
  %v815 = vmul.f32 %v810, %v730
  %v816 = vmul.f32 %v808, %v812
  %v817 = vadd.f32 %v815, %v816
  %v818 = vtanh.pop %v817
  %v819 = vmul.f32 %v814, %v818
  %820 = vmatprep.subr.mxu0 0.0
  %821 = vmatpush1.msra.mxu0 %v206
  %822 = vmatprep.subr.mxu0 0.0
  %823 = vmatpush1.msra.mxu0 %v205
  %824 = vmatprep.subr.mxu0 0.0
  %825 = vmatpush1.msra.mxu0 %v204
  %826 = vmatprep.subr.mxu0 0.0
  %827 = vmatpush1.msra.mxu0 %v203
  %828 = vmatprep.subr.mxu0 0.0
  %829 = vmatpush1.msra.mxu0 %v202
  %830 = vmatprep.subr.mxu0 0.0
  %831 = vmatpush1.msra.mxu0 %v201
  %832 = vmatprep.subr.mxu0 0.0
  %833 = vmatpush1.msra.mxu0 %v200
  %834 = vmatprep.subr.mxu0 0.0
  %835 = vmatpush1.msra.mxu0 %v199
  %836 = vmatprep.subr.mxu0 0.0
  %837 = vmatpush1.msra.mxu0 %v198
  %838 = vmatprep.subr.mxu0 0.0
  %839 = vmatpush1.msra.mxu0 %v197
  %840 = vmatprep.subr.mxu0 0.0
  %841 = vmatpush1.msra.mxu0 %v196
  %842 = vmatprep.subr.mxu0 0.0
  %843 = vmatpush1.msra.mxu0 %v195
  %844 = vmatprep.subr.mxu0 0.0
  %845 = vmatpush1.msra.mxu0 %v194
  %846 = vmatprep.subr.mxu0 0.0
  %847 = vmatpush1.msra.mxu0 %v193
  %848 = vmatprep.subr.mxu0 0.0
  %849 = vmatpush1.msra.mxu0 %v192
  %850 = vmatprep.subr.mxu0 0.0
  %851 = vmatpush1.msra.mxu0 %v191
  %852 = vmatprep.subr.mxu0 0.0
  %853 = vmatpush2.msra.mxu0 0.0
  %854 = vmatprep.subr.mxu0 0.0
  %855 = vmatpush2.msra.mxu0 0.0
  %856 = vmatprep.subr.mxu0 0.0
  %857 = vmatpush2.msra.mxu0 0.0
  %858 = vmatprep.subr.mxu0 0.0
  %859 = vmatpush2.msra.mxu0 0.0
  %860 = vmatprep.subr.mxu0 0.0
  %861 = vmatpush2.msra.mxu0 0.0
  %862 = vmatprep.subr.mxu0 0.0
  %863 = vmatpush2.msra.mxu0 0.0
  %864 = vmatprep.subr.mxu0 0.0
  %865 = vmatpush2.msra.mxu0 0.0
  %866 = vmatprep.subr.mxu0 0.0
  %867 = vmatpush2.msra.mxu0 0.0
  %868 = vmatprep.subr.mxu0 0.0
  %869 = vmatpush2.msra.mxu0 0.0
  %870 = vmatprep.subr.mxu0 0.0
  %871 = vmatpush2.msra.mxu0 0.0
  %872 = vmatprep.subr.mxu0 0.0
  %873 = vmatpush2.msra.mxu0 0.0
  %874 = vmatprep.subr.mxu0 0.0
  %875 = vmatpush2.msra.mxu0 0.0
  %876 = vmatprep.subr.mxu0 0.0
  %877 = vmatpush2.msra.mxu0 0.0
  %878 = vmatprep.subr.mxu0 0.0
  %879 = vmatpush2.msra.mxu0 0.0
  %880 = vmatprep.subr.mxu0 0.0
  %881 = vmatpush2.msra.mxu0 0.0
  %882 = vmatprep.subr.mxu0 0.0
  %883 = vmatpush2.msra.mxu0 0.0
  %884 = vmatprep.mubr.f32.mxu0 0.0
  %885 = vmatmul.mubr.f32.gmra.mxu0 %v819
  %v886 = vpop.f32.mrf.mxu0
  %v887 = vadd.f32 0.0, %v886
  %v888 = vpop.f32.mrf.mxu0
  %889 = vdwg.mxu0
  %v890 = vadd.f32 %v188, %v887
  %v891 = vmul.f32 %v890, %v210
  %v892 = vtanh.pop %v891
  %v893 = vmul.f32 %v892, 0.5
  %v894 = vadd.f32 %v893, 0.5
  %v895 = vsel %vm209, %v892, %v894
  %896 = vrot.lane.b32.xlu0 %v895, 96
  %v897 = vpop.permute.xlu0 %896
  %898 = vrot.lane.b32.xlu0 %v895, 64
  %v899 = vpop.permute.xlu0 %898
  %900 = vrot.lane.b32.xlu0 %v895, 32
  %v901 = vpop.permute.xlu0 %900
  %v902 = vmul.f32 %v897, %v817
  %v903 = vmul.f32 %v895, %v899
  %v904 = vadd.f32 %v902, %v903
  %v905 = vtanh.pop %v904
  %v906 = vmul.f32 %v901, %v905
  %v907 = vld [vmem:[%s3] sm:$0xff]
  %v908 = vld [vmem:[%s3 + $0x8] sm:$0xff]
  %v909 = vld [vmem:[%s3 + $0x10] sm:$0xff]
  %v910 = vld [vmem:[%s3 + $0x18] sm:$0xff]
  %v911 = vld [vmem:[%s3 + $0x20] sm:$0xff]
  %v912 = vld [vmem:[%s3 + $0x28] sm:$0xff]
  %v913 = vld [vmem:[%s3 + $0x30] sm:$0xff]
  %v914 = vld [vmem:[%s3 + $0x38] sm:$0xff]
  %v915 = vld [vmem:[%s3 + $0x40] sm:$0xff]
  %v916 = vld [vmem:[%s3 + $0x48] sm:$0xff]
  %v917 = vld [vmem:[%s3 + $0x50] sm:$0xff]
  %v918 = vld [vmem:[%s3 + $0x58] sm:$0xff]
  %v919 = vld [vmem:[%s3 + $0x60] sm:$0xff]
  %v920 = vld [vmem:[%s3 + $0x68] sm:$0xff]
  %v921 = vld [vmem:[%s3 + $0x70] sm:$0xff]
  %v922 = vld [vmem:[%s3 + $0x78] sm:$0xff]
  %v923 = vld [vmem:[%s4] sm:$0x1]
  %v925 = vlaneseq
  %v926 = vshrl.u32 %v925, 7
  %v927 = vsub.s32 0, %v926
  %v928 = vrot.slane %v923, %v927
  %930 = vmatprep.subr.mxu0 0.0
  %931 = vmatpush1.msra.mxu0 %v922
  %932 = vmatprep.subr.mxu0 0.0
  %933 = vmatpush1.msra.mxu0 %v921
  %934 = vmatprep.subr.mxu0 0.0
  %935 = vmatpush1.msra.mxu0 %v920
  %936 = vmatprep.subr.mxu0 0.0
  %937 = vmatpush1.msra.mxu0 %v919
  %938 = vmatprep.subr.mxu0 0.0
  %939 = vmatpush1.msra.mxu0 %v918
  %940 = vmatprep.subr.mxu0 0.0
  %941 = vmatpush1.msra.mxu0 %v917
  %942 = vmatprep.subr.mxu0 0.0
  %943 = vmatpush1.msra.mxu0 %v916
  %944 = vmatprep.subr.mxu0 0.0
  %945 = vmatpush1.msra.mxu0 %v915
  %946 = vmatprep.subr.mxu0 0.0
  %947 = vmatpush1.msra.mxu0 %v914
  %948 = vmatprep.subr.mxu0 0.0
  %949 = vmatpush1.msra.mxu0 %v913
  %950 = vmatprep.subr.mxu0 0.0
  %951 = vmatpush1.msra.mxu0 %v912
  %952 = vmatprep.subr.mxu0 0.0
  %953 = vmatpush1.msra.mxu0 %v911
  %954 = vmatprep.subr.mxu0 0.0
  %955 = vmatpush1.msra.mxu0 %v910
  %956 = vmatprep.subr.mxu0 0.0
  %957 = vmatpush1.msra.mxu0 %v909
  %958 = vmatprep.subr.mxu0 0.0
  %959 = vmatpush1.msra.mxu0 %v908
  %960 = vmatprep.subr.mxu0 0.0
  %961 = vmatpush1.msra.mxu0 %v907
  %962 = vmatprep.subr.mxu0 0.0
  %963 = vmatpush2.msra.mxu0 0.0
  %964 = vmatprep.subr.mxu0 0.0
  %965 = vmatpush2.msra.mxu0 0.0
  %966 = vmatprep.subr.mxu0 0.0
  %967 = vmatpush2.msra.mxu0 0.0
  %968 = vmatprep.subr.mxu0 0.0
  %969 = vmatpush2.msra.mxu0 0.0
  %970 = vmatprep.subr.mxu0 0.0
  %971 = vmatpush2.msra.mxu0 0.0
  %972 = vmatprep.subr.mxu0 0.0
  %973 = vmatpush2.msra.mxu0 0.0
  %974 = vmatprep.subr.mxu0 0.0
  %975 = vmatpush2.msra.mxu0 0.0
  %976 = vmatprep.subr.mxu0 0.0
  %977 = vmatpush2.msra.mxu0 0.0
  %978 = vmatprep.subr.mxu0 0.0
  %979 = vmatpush2.msra.mxu0 0.0
  %980 = vmatprep.subr.mxu0 0.0
  %981 = vmatpush2.msra.mxu0 0.0
  %982 = vmatprep.subr.mxu0 0.0
  %983 = vmatpush2.msra.mxu0 0.0
  %984 = vmatprep.subr.mxu0 0.0
  %985 = vmatpush2.msra.mxu0 0.0
  %986 = vmatprep.subr.mxu0 0.0
  %987 = vmatpush2.msra.mxu0 0.0
  %988 = vmatprep.subr.mxu0 0.0
  %989 = vmatpush2.msra.mxu0 0.0
  %990 = vmatprep.subr.mxu0 0.0
  %991 = vmatpush2.msra.mxu0 0.0
  %992 = vmatprep.subr.mxu0 0.0
  %993 = vmatpush2.msra.mxu0 0.0
  %994 = vmatprep.mubr.f32.mxu0 0.0
  %995 = vmatmul.mubr.f32.gmra.mxu0 %v906
  %v996 = vpop.f32.mrf.mxu0
  %v997 = vadd.f32 %v928, %v996
  %v998 = vpop.f32.mrf.mxu0
  %999 = vdwg.mxu0
  %1000 = vst [vmem:[%s5] sm:$0xff] %v997
  // Predicated region
  $region22: #{instruction_classifier_forward.1} parent=0 // pred_check
    _
  $region23: #{instruction_classifier_forward.1} parent=0 // pred_check_branch
    %1002 = sbr.rel (0) target = $region25
  $region24: #{instruction_classifier_forward.1} parent=0 // pred_region
    _
  $region25: #{instruction_classifier_forward.1} parent=0 // pred_fallthru
    _
  // Predicated region
  $region26: #{instruction_classifier_forward.1} parent=0 // pred_check
    _
  $region27: #{instruction_classifier_forward.1} parent=0 // pred_check_branch
    %1004 = sbr.rel (0) target = $region29
  $region28: #{instruction_classifier_forward.1} parent=0 // pred_region
    _
  $region29: #{instruction_classifier_forward.1} parent=0 // pred_fallthru
    _

</llo_original>
